<compile_context>
chip_gen: v6e
topology: v6e:2x2x1
jax: 0.10.0
libtpu: 0.0.40
codegen_flags: <defaults>
</compile_context>

<pallas_src>
import math
from dataclasses import dataclass
from functools import partial

import numpy as np
import jax
import jax.numpy as jnp
from jax.experimental import pallas as pl
from jax.experimental.pallas import tpu as pltpu


MATMUL_DTYPE = jnp.bfloat16      # MXU operand dtype (accumulation stays f32)
ROW_TILE_CAP = 512               # max rows per grid step for the linear kernels


# ----------------------------- config ---------------------------------------

@dataclass(frozen=True)
class SwinConfig:
    image_size: int = 16
    patch_size: int = 4
    num_channels: int = 4
    embed_dim: int = 32
    depths: tuple = (2, 2)
    num_heads: tuple = (2, 4)
    window_size: int = 2
    mlp_ratio: float = 4.0
    qkv_bias: bool = True
    layer_norm_eps: float = 1e-5


@dataclass
class SwinModelOutput:
    last_hidden_state: jnp.ndarray
    pooler_output: jnp.ndarray


# ----------------------------- in-kernel math helpers ------------------------

def _erf(x):
    # Abramowitz & Stegun 7.1.26 rational approximation (|err| < 1.5e-7),
    # built only from ops guaranteed to lower in Mosaic (exp/mul/add/where).
    a1, a2, a3, a4, a5 = (0.254829592, -0.284496736, 1.421413741,
                          -1.453152027, 1.061405429)
    p = 0.3275911
    s = jnp.where(x >= 0.0, 1.0, -1.0)
    ax = jnp.abs(x)
    t = 1.0 / (1.0 + p * ax)
    poly = ((((a5 * t + a4) * t + a3) * t + a2) * t + a1) * t
    return s * (1.0 - poly * jnp.exp(-ax * ax))


def _gelu(x):
    # erf-based GELU matching torch.nn.GELU() (exact variant), kept in f32.
    return 0.5 * x * (1.0 + _erf(x * (1.0 / math.sqrt(2.0))))


def _ln(x, g, b, eps):
    mean = jnp.mean(x, axis=-1, keepdims=True)
    var = jnp.mean(jnp.square(x - mean), axis=-1, keepdims=True)
    return (x - mean) * jax.lax.rsqrt(var + eps) * g + b


def _mm(x_f32, w_ref):
    # bf16 MXU operands, f32 accumulation.
    return jnp.dot(x_f32.astype(MATMUL_DTYPE),
                   w_ref[...].astype(MATMUL_DTYPE),
                   preferred_element_type=jnp.float32)


def _row_tile(m, cap=ROW_TILE_CAP):
    if m <= cap:
        return m
    for tm in (cap, 256, 128, 64, 32, 16, 8):
        if tm <= cap and m % tm == 0:
            return tm
    return m            # full-extent fallback (exempt from (8,128) rule)


# ----------------------------- Pallas kernels -------------------------------

def _ln_linear_kernel(x_ref, g_ref, bt_ref, w_ref, b_ref, o_ref, *, eps,
                      activation):
    x = x_ref[...].astype(jnp.float32)
    xn = _ln(x, g_ref[...].astype(jnp.float32),
             bt_ref[...].astype(jnp.float32), eps)
    acc = _mm(xn, w_ref) + b_ref[...].astype(jnp.float32)
    if activation == "gelu":
        acc = _gelu(acc)
    o_ref[...] = acc.astype(o_ref.dtype)


def _linear_ln_kernel(x_ref, w_ref, b_ref, g_ref, bt_ref, o_ref, *, eps):
    x = x_ref[...].astype(jnp.float32)
    acc = _mm(x, w_ref) + b_ref[...].astype(jnp.float32)
    y = _ln(acc, g_ref[...].astype(jnp.float32),
            bt_ref[...].astype(jnp.float32), eps)
    o_ref[...] = y.astype(o_ref.dtype)


def _linear_residual_kernel(x_ref, res_ref, w_ref, b_ref, o_ref):
    x = x_ref[...].astype(jnp.float32)
    acc = _mm(x, w_ref) + b_ref[...].astype(jnp.float32)
    o_ref[...] = (acc + res_ref[...].astype(jnp.float32)).astype(o_ref.dtype)


def _mlp_block_kernel(x_ref, g_ref, bt_ref, w1_ref, b1_ref, w2_ref, b2_ref,
                      o_ref, *, eps):
    # out = x + fc2(gelu(fc1(LN(x))))
    x = x_ref[...].astype(jnp.float32)
    xn = _ln(x, g_ref[...].astype(jnp.float32),
             bt_ref[...].astype(jnp.float32), eps)
    h = _gelu(_mm(xn, w1_ref) + b1_ref[...].astype(jnp.float32))
    y = _mm(h, w2_ref) + b2_ref[...].astype(jnp.float32)
    o_ref[...] = (x + y).astype(o_ref.dtype)


def _window_attention_kernel(q_ref, k_ref, v_ref, rb_ref, m_ref, o_ref, *,
                             scale, wb, heads):
    T, Dh = q_ref.shape[2], q_ref.shape[3]
    q = q_ref[...].astype(MATMUL_DTYPE).reshape(wb * heads, T, Dh)
    k = k_ref[...].astype(MATMUL_DTYPE).reshape(wb * heads, T, Dh)
    v = v_ref[...].astype(MATMUL_DTYPE).reshape(wb * heads, T, Dh)
    # bias: relative-position bias broadcast over windows + per-window mask.
    bias = (rb_ref[...].astype(jnp.float32)[None, :, :, :] +
            m_ref[...].astype(jnp.float32)[:, None, :, :])
    bias = bias.reshape(wb * heads, T, T)
    scores = jnp.einsum("bqd,bkd->bqk", q, k,
                        preferred_element_type=jnp.float32) * scale + bias
    scores = scores - jnp.max(scores, axis=-1, keepdims=True)
    p = jnp.exp(scores)
    p = p * pl.reciprocal(jnp.sum(p, axis=-1, keepdims=True), approx=True)
    ctx = jnp.einsum("bqk,bkd->bqd", p.astype(MATMUL_DTYPE), v,
                     preferred_element_type=jnp.float32)
    o_ref[...] = ctx.reshape(wb, heads, T, Dh).astype(o_ref.dtype)


def _ln_meanpool_kernel(x_ref, g_ref, bt_ref, seq_ref, pool_ref, *, eps):
    x = x_ref[0].astype(jnp.float32)                       # (S, D)
    y = _ln(x, g_ref[...].astype(jnp.float32),
            bt_ref[...].astype(jnp.float32), eps)
    seq_ref[0] = y.astype(seq_ref.dtype)
    pool_ref[0] = jnp.mean(y, axis=0, keepdims=True).astype(pool_ref.dtype)


# ----------------------------- Pallas wrappers -------------------------------

_PARALLEL = pltpu.CompilerParams(dimension_semantics=("parallel",))


def fused_ln_linear(x, gamma, beta, w, b, eps, activation=None):
    """act(LN(x) @ w + b); x: (..., K), w: (K, N)."""
    orig = x.shape
    K = orig[-1]
    N = w.shape[1]
    x2 = x.reshape(-1, K)
    M = x2.shape[0]
    if b is None:
        b = jnp.zeros((N,), jnp.float32)
    TM = _row_tile(M)
    out = pl.pallas_call(
        partial(_ln_linear_kernel, eps=eps, activation=activation),
        out_shape=jax.ShapeDtypeStruct((M, N), x.dtype),
        grid=(M // TM,),
        in_specs=[
            pl.BlockSpec((TM, K), lambda i: (i, 0)),
            pl.BlockSpec((1, K), lambda i: (0, 0)),
            pl.BlockSpec((1, K), lambda i: (0, 0)),
            pl.BlockSpec((K, N), lambda i: (0, 0)),
            pl.BlockSpec((1, N), lambda i: (0, 0)),
        ],
        out_specs=pl.BlockSpec((TM, N), lambda i: (i, 0)),
        compiler_params=_PARALLEL,
    )(x2, gamma.reshape(1, K), beta.reshape(1, K), w, b.reshape(1, N))
    return out.reshape(orig[:-1] + (N,))


def fused_linear_ln(x, w, b, gamma, beta, eps):
    """LN(x @ w + b); used for patch embedding (+ its LayerNorm)."""
    orig = x.shape
    K = orig[-1]
    N = w.shape[1]
    x2 = x.reshape(-1, K)
    M = x2.shape[0]
    TM = _row_tile(M)
    out = pl.pallas_call(
        partial(_linear_ln_kernel, eps=eps),
        out_shape=jax.ShapeDtypeStruct((M, N), x.dtype),
        grid=(M // TM,),
        in_specs=[
            pl.BlockSpec((TM, K), lambda i: (i, 0)),
            pl.BlockSpec((K, N), lambda i: (0, 0)),
            pl.BlockSpec((1, N), lambda i: (0, 0)),
            pl.BlockSpec((1, N), lambda i: (0, 0)),
            pl.BlockSpec((1, N), lambda i: (0, 0)),
        ],
        out_specs=pl.BlockSpec((TM, N), lambda i: (i, 0)),
        compiler_params=_PARALLEL,
    )(x2, w, b.reshape(1, N), gamma.reshape(1, N), beta.reshape(1, N))
    return out.reshape(orig[:-1] + (N,))


def fused_linear_residual(x, res, w, b):
    """res + x @ w + b; used for attention output proj + residual add."""
    orig = x.shape
    K = orig[-1]
    N = w.shape[1]
    x2 = x.reshape(-1, K)
    r2 = res.reshape(-1, N)
    M = x2.shape[0]
    TM = _row_tile(M)
    out = pl.pallas_call(
        _linear_residual_kernel,
        out_shape=jax.ShapeDtypeStruct((M, N), x.dtype),
        grid=(M // TM,),
        in_specs=[
            pl.BlockSpec((TM, K), lambda i: (i, 0)),
            pl.BlockSpec((TM, N), lambda i: (i, 0)),
            pl.BlockSpec((K, N), lambda i: (0, 0)),
            pl.BlockSpec((1, N), lambda i: (0, 0)),
        ],
        out_specs=pl.BlockSpec((TM, N), lambda i: (i, 0)),
        compiler_params=_PARALLEL,
    )(x2, r2, w, b.reshape(1, N))
    return out.reshape(res.shape)


def fused_mlp_block(x, gamma, beta, w1, b1, w2, b2, eps):
    """x + fc2(gelu(fc1(LN(x)))) in one kernel (LN2 + MLP + residual)."""
    orig = x.shape
    D = orig[-1]
    Hd = w1.shape[1]
    x2 = x.reshape(-1, D)
    M = x2.shape[0]
    TM = _row_tile(M)
    out = pl.pallas_call(
        partial(_mlp_block_kernel, eps=eps),
        out_shape=jax.ShapeDtypeStruct((M, D), x.dtype),
        grid=(M // TM,),
        in_specs=[
            pl.BlockSpec((TM, D), lambda i: (i, 0)),
            pl.BlockSpec((1, D), lambda i: (0, 0)),
            pl.BlockSpec((1, D), lambda i: (0, 0)),
            pl.BlockSpec((D, Hd), lambda i: (0, 0)),
            pl.BlockSpec((1, Hd), lambda i: (0, 0)),
            pl.BlockSpec((Hd, D), lambda i: (0, 0)),
            pl.BlockSpec((1, D), lambda i: (0, 0)),
        ],
        out_specs=pl.BlockSpec((TM, D), lambda i: (i, 0)),
        compiler_params=_PARALLEL,
    )(x2, gamma.reshape(1, D), beta.reshape(1, D),
      w1, b1.reshape(1, Hd), w2, b2.reshape(1, D))
    return out.reshape(orig)


def pallas_window_attention(q, k, v, rel_bias, mask, scale):
    """q,k,v: (B*nW, heads, T, Dh); rel_bias: (heads, T, T); mask: (nW, T, T).

    Windows are ordered (batch, window), so a grid step over one image's nW
    windows lines up exactly with `mask`.  rel_bias/mask index_maps are
    constant -> single resident VMEM copy (no per-window bias replication).
    """
    BW, heads, T, Dh = q.shape
    nW = mask.shape[0]
    WB = nW
    assert BW % WB == 0
    out = pl.pallas_call(
        partial(_window_attention_kernel, scale=scale, wb=WB, heads=heads),
        out_shape=jax.ShapeDtypeStruct((BW, heads, T, Dh), q.dtype),
        grid=(BW // WB,),
        in_specs=[
            pl.BlockSpec((WB, heads, T, Dh), lambda i: (i, 0, 0, 0)),
            pl.BlockSpec((WB, heads, T, Dh), lambda i: (i, 0, 0, 0)),
            pl.BlockSpec((WB, heads, T, Dh), lambda i: (i, 0, 0, 0)),
            pl.BlockSpec((heads, T, T), lambda i: (0, 0, 0)),
            pl.BlockSpec((nW, T, T), lambda i: (0, 0, 0)),
        ],
        out_specs=pl.BlockSpec((WB, heads, T, Dh), lambda i: (i, 0, 0, 0)),
        compiler_params=_PARALLEL,
    )(q, k, v, rel_bias, mask)
    return out


def fused_final_ln_meanpool(x, gamma, beta, eps):
    """Final LayerNorm + AdaptiveAvgPool1d(1) over the sequence in one pass."""
    B, S, D = x.shape
    seq, pool = pl.pallas_call(
        partial(_ln_meanpool_kernel, eps=eps),
        out_shape=(jax.ShapeDtypeStruct((B, S, D), x.dtype),
                   jax.ShapeDtypeStruct((B, 1, D), x.dtype)),
        grid=(B,),
        in_specs=[
            pl.BlockSpec((1, S, D), lambda b: (b, 0, 0)),
            pl.BlockSpec((1, D), lambda b: (0, 0)),
            pl.BlockSpec((1, D), lambda b: (0, 0)),
        ],
        out_specs=(
            pl.BlockSpec((1, S, D), lambda b: (b, 0, 0)),
            pl.BlockSpec((1, 1, D), lambda b: (b, 0, 0)),
        ),
        compiler_params=_PARALLEL,
    )(x, gamma.reshape(1, D), beta.reshape(1, D))
    return seq, pool.reshape(B, D)


# ----------------------------- static helpers (glue) ------------------------

def window_partition(x, ws):
    B, H, W, C = x.shape
    x = x.reshape(B, H // ws, ws, W // ws, ws, C)
    x = jnp.transpose(x, (0, 1, 3, 2, 4, 5))
    return x.reshape(-1, ws, ws, C)


def window_reverse(windows, ws, H, W):
    C = windows.shape[-1]
    x = windows.reshape(-1, H // ws, W // ws, ws, ws, C)
    x = jnp.transpose(x, (0, 1, 3, 2, 4, 5))
    return x.reshape(-1, H, W, C)


def make_relative_position_index(ws):
    coords = np.stack(np.meshgrid(np.arange(ws), np.arange(ws), indexing="ij"))
    coords = coords.reshape(2, -1)
    rel = coords[:, :, None] - coords[:, None, :]
    rel = rel.transpose(1, 2, 0).astype(np.int64)
    rel[:, :, 0] += ws - 1
    rel[:, :, 1] += ws - 1
    rel[:, :, 0] *= 2 * ws - 1
    return rel.sum(-1)  # (T, T)


def make_shift_attn_mask(H, W, ws, shift):
    img_mask = np.zeros((1, H, W, 1), dtype=np.float32)
    slices = (slice(0, -ws), slice(-ws, -shift), slice(-shift, None))
    cnt = 0
    for h in slices:
        for w in slices:
            img_mask[:, h, w, :] = cnt
            cnt += 1
    m = img_mask.reshape(1, H // ws, ws, W // ws, ws, 1)
    m = m.transpose(0, 1, 3, 2, 4, 5).reshape(-1, ws * ws)
    diff = m[:, None, :] - m[:, :, None]
    return np.where(diff != 0, -100.0, 0.0).astype(np.float32)  # (nW, T, T)


# ----------------------------- params ---------------------------------------

def init_swin_params(cfg, key):
    def nxt():
        nonlocal key
        key, sub = jax.random.split(key)
        return sub

    def normal(shape, std=0.02):
        return jax.random.normal(nxt(), shape, dtype=jnp.float32) * std

    zeros = lambda s: jnp.zeros(s, jnp.float32)
    ones = lambda s: jnp.ones(s, jnp.float32)

    E, P, C = cfg.embed_dim, cfg.patch_size, cfg.num_channels
    num_layers = len(cfg.depths)
    num_features = int(E * 2 ** (num_layers - 1))
    ws = cfg.window_size

    params = {
        "patch_embed": {"w": normal((E, C, P, P)), "b": zeros((E,))},
        "embed_norm": {"g": ones((E,)), "b": zeros((E,))},
        "stages": [],
        "final_norm": {"g": ones((num_features,)), "b": zeros((num_features,))},
    }
    for i in range(num_layers):
        dim = int(E * 2 ** i)
        heads = cfg.num_heads[i]
        hidden = int(cfg.mlp_ratio * dim)
        blocks = []
        for _ in range(cfg.depths[i]):
            wq, wk, wv = normal((dim, dim)), normal((dim, dim)), normal((dim, dim))
            blocks.append({
                "ln1": {"g": ones((dim,)), "b": zeros((dim,))},
                # fused QKV weight: output ordering [q | k | v]
                "qkv": {"w": jnp.concatenate([wq, wk, wv], axis=1),
                        "b": zeros((3 * dim,))},
                "proj": {"w": normal((dim, dim)), "b": zeros((dim,))},
                "rel_bias_table": normal(((2 * ws - 1) ** 2, heads)),
                "ln2": {"g": ones((dim,)), "b": zeros((dim,))},
                "fc1": {"w": normal((dim, hidden)), "b": zeros((hidden,))},
                "fc2": {"w": normal((hidden, dim)), "b": zeros((dim,))},
            })
        stage = {"blocks": blocks}
        if i < num_layers - 1:
            stage["downsample"] = {
                "norm": {"g": ones((4 * dim,)), "b": zeros((4 * dim,))},
                "reduction_w": normal((4 * dim, 2 * dim)),   # Linear, no bias
            }
        params["stages"].append(stage)
    return params


# ----------------------------- model forward --------------------------------

def swin_block(hidden, blk, cfg, dim, heads, H, W, block_idx):
    ws = cfg.window_size
    shift = 0 if block_idx % 2 == 0 else ws // 2
    if min(H, W) <= ws:           # HF set_shift_and_window_size
        shift = 0
        ws = min(H, W)
    # TODO(synk): padding for H/W not divisible by window size is omitted
    # (never triggered for the chosen synthetic shapes).
    B, L, C = hidden.shape
    T = ws * ws
    eps = cfg.layer_norm_eps
    head_dim = dim // heads
    nW = (H // ws) * (W // ws)

    shortcut = hidden

    # Shift + window partition are pure token permutations and commute with the
    # row-wise LayerNorm, so LN1 is fused into the QKV matmul kernel below.
    x = hidden.reshape(B, H, W, C)
    if shift > 0:
        x = jnp.roll(x, shift=(-shift, -shift), axis=(1, 2))
    windows = window_partition(x, ws).reshape(-1, T, C)    # (B*nW, T, C)
    B_ = windows.shape[0]

    qkv = fused_ln_linear(windows, blk["ln1"]["g"], blk["ln1"]["b"],
                          blk["qkv"]["w"], blk["qkv"]["b"], eps)  # (B_, T, 3C)
    qkv = qkv.reshape(B_, T, 3, heads, head_dim)
    qkv = jnp.transpose(qkv, (2, 0, 3, 1, 4))              # (3, B_, heads, T, Dh)
    qh, kh, vh = qkv[0], qkv[1], qkv[2]

    rel_index = make_relative_position_index(ws)                    # (T, T)
    rel_bias = blk["rel_bias_table"][rel_index.reshape(-1)]         # (T*T, heads)
    rel_bias = jnp.transpose(rel_bias.reshape(T, T, heads), (2, 0, 1))  # (h,T,T)
    if shift > 0:
        mask = jnp.asarray(make_shift_attn_mask(H, W, ws, shift))   # (nW, T, T)
    else:
        mask = jnp.zeros((nW, T, T), jnp.float32)

    scale = 1.0 / math.sqrt(head_dim)
    ctx = pallas_window_attention(qh, kh, vh,
                                  rel_bias.astype(hidden.dtype),
                                  mask.astype(hidden.dtype),
                                  scale)                   # (B_, heads, T, Dh)
    ctx = jnp.transpose(ctx, (0, 2, 1, 3)).reshape(B_, T, C)

    ctx = ctx.reshape(-1, ws, ws, C)
    x = window_reverse(ctx, ws, H, W)
    if shift > 0:
        x = jnp.roll(x, shift=(shift, shift), axis=(1, 2))
    x = x.reshape(B, L, C)

    # The per-token proj commutes with window_reverse -> fuse proj + residual.
    hidden = fused_linear_residual(x, shortcut, blk["proj"]["w"], blk["proj"]["b"])

    # LN2 + fc1 + GELU + fc2 + residual fused in one kernel.
    return fused_mlp_block(hidden, blk["ln2"]["g"], blk["ln2"]["b"],
                           blk["fc1"]["w"], blk["fc1"]["b"],
                           blk["fc2"]["w"], blk["fc2"]["b"], eps)


def patch_merging(hidden, ds, cfg, H, W):
    B, L, C = hidden.shape
    x = hidden.reshape(B, H, W, C)
    x0 = x[:, 0::2, 0::2, :]
    x1 = x[:, 1::2, 0::2, :]
    x2 = x[:, 0::2, 1::2, :]
    x3 = x[:, 1::2, 1::2, :]
    x = jnp.concatenate([x0, x1, x2, x3], axis=-1).reshape(B, -1, 4 * C)
    # LayerNorm + reduction Linear (no bias) fused in one kernel.
    return fused_ln_linear(x, ds["norm"]["g"], ds["norm"]["b"],
                           ds["reduction_w"], None, cfg.layer_norm_eps)


def swin_model_forward(params, cfg, pixel_values):
    B, C, Himg, Wimg = pixel_values.shape
    P, E = cfg.patch_size, cfg.embed_dim
    gh, gw = Himg // P, Wimg // P

    # Patch embedding: Conv2d(k=s=patch) == im2col + matmul, fused with the
    # embedding LayerNorm in a single kernel.
    x = pixel_values.reshape(B, C, gh, P, gw, P)
    x = jnp.transpose(x, (0, 2, 4, 1, 3, 5)).reshape(B, gh * gw, C * P * P)
    w = params["patch_embed"]["w"].reshape(E, C * P * P).T
    hidden = fused_linear_ln(x, w, params["patch_embed"]["b"],
                             params["embed_norm"]["g"],
                             params["embed_norm"]["b"],
                             cfg.layer_norm_eps)            # (B, L, E)

    H, W = gh, gw
    for i, stage in enumerate(params["stages"]):
        dim = int(E * 2 ** i)
        heads = cfg.num_heads[i]
        for d, blk in enumerate(stage["blocks"]):
            hidden = swin_block(hidden, blk, cfg, dim, heads, H, W, d)
        if "downsample" in stage:
            hidden = patch_merging(hidden, stage["downsample"], cfg, H, W)
            H, W = (H + 1) // 2, (W + 1) // 2

    # Final LayerNorm + (transpose + AdaptiveAvgPool1d(1) + flatten) fused.
    seq_out, pooled = fused_final_ln_meanpool(
        hidden, params["final_norm"]["g"], params["final_norm"]["b"],
        cfg.layer_norm_eps)
    return SwinModelOutput(last_hidden_state=seq_out, pooler_output=pooled)


# ----------------------------- main ------------------------------------------

if __name__ == "__main__":
    cfg = SwinConfig()
    root = jax.random.PRNGKey(0)
    pkey, xkey = jax.random.split(root)
    params = init_swin_params(cfg, pkey)
    pixel_values = jax.random.normal(
        xkey, (2, cfg.num_channels, cfg.image_size, cfg.image_size),
        dtype=jnp.float32)

    out = swin_model_forward(params, cfg, pixel_values)
    jax.block_until_ready((out.last_hidden_state, out.pooler_output))

    num_layers = len(cfg.depths)
    num_features = int(cfg.embed_dim * 2 ** (num_layers - 1))
    final_seq = (cfg.image_size // cfg.patch_size // 2 ** (num_layers - 1)) ** 2
    assert out.last_hidden_state.shape == (2, final_seq, num_features)
    assert out.pooler_output.shape == (2, num_features)
    assert bool(jnp.all(jnp.isfinite(out.last_hidden_state)))
    assert bool(jnp.all(jnp.isfinite(out.pooler_output)))
    print("KERNEL_OK")
</pallas_src>

<mosaic_0001>
module attributes {stable_mosaic.version = 11 : i64} {
  func.func @_linear_ln_kernel(%arg0: i32, %arg1: memref<32x64xf32, #tpu.memory_space<vmem>>, %arg2: memref<64x32xf32, #tpu.memory_space<vmem>>, %arg3: memref<1x32xf32, #tpu.memory_space<vmem>>, %arg4: memref<1x32xf32, #tpu.memory_space<vmem>>, %arg5: memref<1x32xf32, #tpu.memory_space<vmem>>, %arg6: memref<32x32xf32, #tpu.memory_space<vmem>>) attributes {dimension_semantics = [#tpu.dimension_semantics<parallel>], iteration_bounds = array<i64: 1>, scalar_prefetch = 0 : i64, scratch_operands = 0 : i64, tpu.core_type = #tpu.core_type<tc>, window_params = [{transform_indices = @transform_0, window_bounds = array<i64: 32, 64>}, {pipeline_mode = #tpu.pipeline_mode<synchronous>, transform_indices = @transform_1, window_bounds = array<i64: 64, 32>}, {pipeline_mode = #tpu.pipeline_mode<synchronous>, transform_indices = @transform_2, window_bounds = array<i64: 1, 32>}, {pipeline_mode = #tpu.pipeline_mode<synchronous>, transform_indices = @transform_3, window_bounds = array<i64: 1, 32>}, {pipeline_mode = #tpu.pipeline_mode<synchronous>, transform_indices = @transform_4, window_bounds = array<i64: 1, 32>}, {transform_indices = @transform_5, window_bounds = array<i64: 32, 32>}]} {
    %c0 = arith.constant 0 : index
    %c0_0 = arith.constant 0 : index
    %0 = vector.load %arg1[%c0, %c0_0] : memref<32x64xf32, #tpu.memory_space<vmem>>, vector<32x64xf32>
    %1 = arith.truncf %0 : vector<32x64xf32> to vector<32x64xbf16>
    %c0_1 = arith.constant 0 : index
    %c0_2 = arith.constant 0 : index
    %2 = vector.load %arg2[%c0_1, %c0_2] : memref<64x32xf32, #tpu.memory_space<vmem>>, vector<64x32xf32>
    %3 = arith.truncf %2 : vector<64x32xf32> to vector<64x32xbf16>
    %cst = arith.constant dense<0.000000e+00> : vector<32x32xf32>
    %4 = tpu.matmul %1, %3, %cst {dimension_numbers = #tpu.dot_dimension_numbers<[1], [0], [0], [1], [0, 0, 1, 1], [], []>} : vector<32x64xbf16>, vector<64x32xbf16>, vector<32x32xf32> -> vector<32x32xf32>
    %c0_3 = arith.constant 0 : index
    %c0_4 = arith.constant 0 : index
    %5 = vector.load %arg3[%c0_3, %c0_4] : memref<1x32xf32, #tpu.memory_space<vmem>>, vector<1x32xf32>
    %6 = vector.broadcast %5 : vector<1x32xf32> to vector<32x32xf32>
    %7 = arith.addf %4, %6 : vector<32x32xf32>
    %c0_5 = arith.constant 0 : index
    %c0_6 = arith.constant 0 : index
    %8 = vector.load %arg4[%c0_5, %c0_6] : memref<1x32xf32, #tpu.memory_space<vmem>>, vector<1x32xf32>
    %c0_7 = arith.constant 0 : index
    %c0_8 = arith.constant 0 : index
    %9 = vector.load %arg5[%c0_7, %c0_8] : memref<1x32xf32, #tpu.memory_space<vmem>>, vector<1x32xf32>
    %cst_9 = arith.constant dense<0.000000e+00> : vector<32xf32>
    %10 = vector.multi_reduction <add>, %7, %cst_9 [1] : vector<32x32xf32> to vector<32xf32>
    %11 = vector.shape_cast %10 : vector<32xf32> to vector<32x1xf32>
    %cst_10 = arith.constant 3.200000e+01 : f32
    %12 = vector.broadcast %cst_10 : f32 to vector<32x1xf32>
    %13 = arith.divf %11, %12 : vector<32x1xf32>
    %14 = vector.broadcast %13 : vector<32x1xf32> to vector<32x32xf32>
    %15 = arith.subf %7, %14 : vector<32x32xf32>
    %16 = arith.mulf %15, %15 : vector<32x32xf32>
    %cst_11 = arith.constant dense<0.000000e+00> : vector<32xf32>
    %17 = vector.multi_reduction <add>, %16, %cst_11 [1] : vector<32x32xf32> to vector<32xf32>
    %18 = vector.shape_cast %17 : vector<32xf32> to vector<32x1xf32>
    %cst_12 = arith.constant 3.200000e+01 : f32
    %19 = vector.broadcast %cst_12 : f32 to vector<32x1xf32>
    %20 = arith.divf %18, %19 : vector<32x1xf32>
    %21 = vector.broadcast %13 : vector<32x1xf32> to vector<32x32xf32>
    %22 = arith.subf %7, %21 : vector<32x32xf32>
    %cst_13 = arith.constant 9.99999974E-6 : f32
    %23 = vector.broadcast %cst_13 : f32 to vector<32x1xf32>
    %24 = arith.addf %20, %23 : vector<32x1xf32>
    %25 = math.rsqrt %24 : vector<32x1xf32>
    %26 = vector.broadcast %25 : vector<32x1xf32> to vector<32x32xf32>
    %27 = arith.mulf %22, %26 : vector<32x32xf32>
    %28 = vector.broadcast %8 : vector<1x32xf32> to vector<32x32xf32>
    %29 = arith.mulf %27, %28 : vector<32x32xf32>
    %30 = vector.broadcast %9 : vector<1x32xf32> to vector<32x32xf32>
    %31 = arith.addf %29, %30 : vector<32x32xf32>
    %c0_14 = arith.constant 0 : index
    %c0_15 = arith.constant 0 : index
    %32 = vector.load %arg6[%c0_14, %c0_15] : memref<32x32xf32, #tpu.memory_space<vmem>>, vector<32x32xf32>
    tpu.vector_store %arg6[%c0_14, %c0_15], %31 {strides = array<i32>} : memref<32x32xf32, #tpu.memory_space<vmem>>, vector<32x32xf32>,
    return
  }
  func.func @transform_0(%arg0: i32) -> (i32, i32) {
    %c0_i32 = arith.constant 0 : i32
    %c0_i32_0 = arith.constant 0 : i32
    return %arg0, %c0_i32 : i32, i32
  }
  func.func @transform_1(%arg0: i32) -> (i32, i32) {
    %c0_i32 = arith.constant 0 : i32
    %c0_i32_0 = arith.constant 0 : i32
    %c0_i32_1 = arith.constant 0 : i32
    return %c0_i32, %c0_i32_0 : i32, i32
  }
  func.func @transform_2(%arg0: i32) -> (i32, i32) {
    %c0_i32 = arith.constant 0 : i32
    %c0_i32_0 = arith.constant 0 : i32
    %c0_i32_1 = arith.constant 0 : i32
    return %c0_i32, %c0_i32_0 : i32, i32
  }
  func.func @transform_3(%arg0: i32) -> (i32, i32) {
    %c0_i32 = arith.constant 0 : i32
    %c0_i32_0 = arith.constant 0 : i32
    %c0_i32_1 = arith.constant 0 : i32
    return %c0_i32, %c0_i32_0 : i32, i32
  }
  func.func @transform_4(%arg0: i32) -> (i32, i32) {
    %c0_i32 = arith.constant 0 : i32
    %c0_i32_0 = arith.constant 0 : i32
    %c0_i32_1 = arith.constant 0 : i32
    return %c0_i32, %c0_i32_0 : i32, i32
  }
  func.func @transform_5(%arg0: i32) -> (i32, i32) {
    %c0_i32 = arith.constant 0 : i32
    %c0_i32_0 = arith.constant 0 : i32
    return %arg0, %c0_i32 : i32, i32
  }
}

</mosaic_0001>

<llo_original>
// kernel: tpu_custom_call.1
$region0: #{tpu_custom_call.1}
  #allocation0 [shape = 'u32[]', space=smem, size = 0x4, offset = 0x4, fixed_abs, tag = 'smem constant byte address 0x4 - core index']
  #allocation1 [shape = 'u32[144,128]{1,0:T(1,128)}', space=vmem, size = 0x12000, scoped, tag = 'internal scratch']
  %s0 = inlined_call_operand.vmem [shape: f32[32,64], index: 0, kind: input, shape index: {}]
  %s1 = inlined_call_operand.vmem [shape: f32[64,32], index: 1, kind: input, shape index: {}]
  %s2 = inlined_call_operand.vmem [shape: f32[1,32], index: 2, kind: input, shape index: {}]
  %s3 = inlined_call_operand.vmem [shape: f32[1,32], index: 3, kind: input, shape index: {}]
  %s4 = inlined_call_operand.vmem [shape: f32[1,32], index: 4, kind: input, shape index: {}]
  %s5 = inlined_call_operand.hbm [shape: f32[32,32], index: 5, kind: output, shape index: {}]
  %s6 = sld [smem:[#allocation0]]
  $region30: #{tpu_custom_call.1} parent=0
    _
  %s8 = ssub.s32 1, %s6
  %s9 = scalar_select 0, %s8, %s6
  $region1: #{tpu_custom_call.1} parent=0
    #allocation2 [shape = 'u8[16384]{0}', space=vmem, size = 0x4000, scoped, tag = 'output window, operand 0, single buffered']
    #allocation3 [shape = 's32[1]{0}', space=sflag, size = 0x4, scoped, tag = 'scoped memory for tpu_custom_call.1']
    %10 = vsyncpa [#allocation3], 0
    // Predicated region
    $region2: #{tpu_custom_call.1} parent=1 // pred_check
      _
    $region3: #{tpu_custom_call.1} parent=1 // pred_check_branch
      %12 = sbr.rel (0) target = $region5
    $region4: #{tpu_custom_call.1} parent=1 // pred_region
      _
    $region5: #{tpu_custom_call.1} parent=1 // pred_fallthru
      _
    // Predicated region
    $region6: #{tpu_custom_call.1} parent=1 // pred_check
      _
    $region7: #{tpu_custom_call.1} parent=1 // pred_check_branch
      %14 = sbr.rel (0) target = $region9
    $region8: #{tpu_custom_call.1} parent=1 // pred_region
      _
    $region9: #{tpu_custom_call.1} parent=1 // pred_fallthru
      _
    // Predicated region
    $region10: #{tpu_custom_call.1} parent=1 // pred_check
      _
    $region11: #{tpu_custom_call.1} parent=1 // pred_check_branch
      %16 = sbr.rel (0) target = $region13
    $region12: #{tpu_custom_call.1} parent=1 // pred_region
      _
    $region13: #{tpu_custom_call.1} parent=1 // pred_fallthru
      _
    // Predicated region
    $region14: #{tpu_custom_call.1} parent=1 // pred_check
      _
    $region15: #{tpu_custom_call.1} parent=1 // pred_check_branch
      %18 = sbr.rel (0) target = $region17
    $region16: #{tpu_custom_call.1} parent=1 // pred_region
      _
    $region17: #{tpu_custom_call.1} parent=1 // pred_fallthru
      _
    // Predicated region
    $region18: #{tpu_custom_call.1} parent=1 // pred_check
      _
    $region19: #{tpu_custom_call.1} parent=1 // pred_check_branch
      %20 = sbr.rel (0) target = $region21
    $region20: #{tpu_custom_call.1} parent=1 // pred_region
      _
    $region21: #{tpu_custom_call.1} parent=1 // pred_fallthru
      _
    %v22 = vld [vmem:[%s0] sm:$0xff]
    %v23 = vld [vmem:[%s0 + $0x8] sm:$0xff]
    %v24 = vld [vmem:[%s0 + $0x10] sm:$0xff]
    %v25 = vld [vmem:[%s0 + $0x18] sm:$0xff]
    %v26 = vpack.c.bf16 %v23, %v22
    %v27 = vpack.c.bf16 %v25, %v24
    %v28 = vld [vmem:[%s1] sm:$0xff]
    %v29 = vld [vmem:[%s1 + $0x8] sm:$0xff]
    %v30 = vld [vmem:[%s1 + $0x10] sm:$0xff]
    %v31 = vld [vmem:[%s1 + $0x18] sm:$0xff]
    %v32 = vld [vmem:[%s1 + $0x20] sm:$0xff]
    %v33 = vld [vmem:[%s1 + $0x28] sm:$0xff]
    %v34 = vld [vmem:[%s1 + $0x30] sm:$0xff]
    %v35 = vld [vmem:[%s1 + $0x38] sm:$0xff]
    %v36 = vpack.c.bf16 %v29, %v28
    %v37 = vpack.c.bf16 %v31, %v30
    %v38 = vpack.c.bf16 %v33, %v32
    %v39 = vpack.c.bf16 %v35, %v34
    %v40 = vld [vmem:[%s2] sm:$0x1]
    %v42 = vlaneseq
    %v43 = vshrl.u32 %v42, 7
    %v44 = vsub.s32 0, %v43
    %v45 = vrot.slane %v40, %v44
    %vm47 = vcmask 523264
    %v49 = vsel %vm47, %v26, 0
    %v52 = vsel %vm47, %v27, 0
    %54 = vmatprep.subr.bf16.mxu0 0
    %55 = vmatpush1.bf16.msra.mxu0 0
    %56 = vmatprep.subr.bf16.mxu0 0
    %57 = vmatpush1.bf16.msra.mxu0 0
    %58 = vmatprep.subr.bf16.mxu0 0
    %59 = vmatpush1.bf16.msra.mxu0 0
    %60 = vmatprep.subr.bf16.mxu0 0
    %61 = vmatpush1.bf16.msra.mxu0 0
    %62 = vmatprep.subr.bf16.mxu0 0
    %63 = vmatpush1.bf16.msra.mxu0 %v39
    %64 = vmatprep.subr.bf16.mxu0 0
    %65 = vmatpush1.bf16.msra.mxu0 %v38
    %66 = vmatprep.subr.bf16.mxu0 0
    %67 = vmatpush1.bf16.msra.mxu0 %v37
    %68 = vmatprep.subr.bf16.mxu0 0
    %69 = vmatpush1.bf16.msra.mxu0 %v36
    %70 = vmatprep.subr.bf16.mxu0 0
    %71 = vmatpush2.bf16.msra.mxu0 0
    %72 = vmatprep.subr.bf16.mxu0 0
    %73 = vmatpush2.bf16.msra.mxu0 0
    %74 = vmatprep.subr.bf16.mxu0 0
    %75 = vmatpush2.bf16.msra.mxu0 0
    %76 = vmatprep.subr.bf16.mxu0 0
    %77 = vmatpush2.bf16.msra.mxu0 0
    %78 = vmatprep.subr.bf16.mxu0 0
    %79 = vmatpush2.bf16.msra.mxu0 0
    %80 = vmatprep.subr.bf16.mxu0 0
    %81 = vmatpush2.bf16.msra.mxu0 0
    %82 = vmatprep.subr.bf16.mxu0 0
    %83 = vmatpush2.bf16.msra.mxu0 0
    %84 = vmatprep.subr.bf16.mxu0 0
    %85 = vmatpush2.bf16.msra.mxu0 0
    %86 = vmatprep.mubr.bf16.mxu0 0
    %87 = vmatmul.mubr.bf16.gmra.mxu0 %v49
    %v88 = vpop.f32.mrf.mxu0
    %v89 = vadd.f32 %v45, %v88
    %v90 = vpop.f32.mrf.mxu0
    %v91 = vpop.f32.mrf.mxu0
    %v92 = vadd.f32 %v45, %v91
    %v93 = vpop.f32.mrf.mxu0
    %94 = vmatprep.mubr.bf16.mxu0 0
    %95 = vmatmul.mubr.bf16.gmra.mxu0 %v52
    %v96 = vpop.f32.mrf.mxu0
    %v97 = vadd.f32 %v45, %v96
    %v98 = vpop.f32.mrf.mxu0
    %v99 = vpop.f32.mrf.mxu0
    %v100 = vadd.f32 %v45, %v99
    %v101 = vpop.f32.mrf.mxu0
    %102 = vdwg.mxu0
    %v103 = vld [vmem:[%s3] sm:$0x1]
    %v104 = vld [vmem:[%s4] sm:$0x1]
    %vm105 = vcmask 261120
    %v106 = vsel %vm105, %v89, 0.0
    %107 = vadd.xlane.f32.xlu0 %v106
    %v108 = vpop.xlane.xlu0 %107
    %v109 = vsel %vm105, %v92, 0.0
    %110 = vadd.xlane.f32.xlu0 %v109
    %v111 = vpop.xlane.xlu0 %110
    %v112 = vsel %vm105, %v97, 0.0
    %113 = vadd.xlane.f32.xlu0 %v112
    %v114 = vpop.xlane.xlu0 %113
    %v115 = vsel %vm105, %v100, 0.0
    %116 = vadd.xlane.f32.xlu0 %v115
    %v117 = vpop.xlane.xlu0 %116
    %v118 = vrcp.pop 32.0
    %v119 = vmul.f32 %v108, %v118
    %v120 = vmul.f32 %v111, %v118
    %v121 = vmul.f32 %v114, %v118
    %v122 = vmul.f32 %v117, %v118
    %v123 = vsub.f32 %v89, %v119
    %v124 = vsub.f32 %v92, %v120
    %v125 = vsub.f32 %v97, %v121
    %v126 = vsub.f32 %v100, %v122
    %v127 = vmul.f32 %v123, %v123
    %v128 = vmul.f32 %v124, %v124
    %v129 = vmul.f32 %v125, %v125
    %v130 = vmul.f32 %v126, %v126
    %v131 = vsel %vm105, %v127, 0.0
    %132 = vadd.xlane.f32.xlu0 %v131
    %v133 = vpop.xlane.xlu0 %132
    %v134 = vsel %vm105, %v128, 0.0
    %135 = vadd.xlane.f32.xlu0 %v134
    %v136 = vpop.xlane.xlu0 %135
    %v137 = vsel %vm105, %v129, 0.0
    %138 = vadd.xlane.f32.xlu0 %v137
    %v139 = vpop.xlane.xlu0 %138
    %v140 = vsel %vm105, %v130, 0.0
    %141 = vadd.xlane.f32.xlu0 %v140
    %v142 = vpop.xlane.xlu0 %141
    %v143 = vmul.f32 %v133, %v118
    %v144 = vmul.f32 %v136, %v118
    %v145 = vmul.f32 %v139, %v118
    %v146 = vmul.f32 %v142, %v118
    %v147 = vadd.f32 %v143, 1e-05
    %v148 = vadd.f32 %v144, 1e-05
    %v149 = vadd.f32 %v145, 1e-05
    %v150 = vadd.f32 %v146, 1e-05
    %v151 = vrsqrt.pop %v147
    %v152 = vrsqrt.pop %v148
    %v153 = vrsqrt.pop %v149
    %v154 = vrsqrt.pop %v150
    %v155 = vmul.f32 %v123, %v151
    %v156 = vmul.f32 %v124, %v152
    %v157 = vmul.f32 %v125, %v153
    %v158 = vmul.f32 %v126, %v154
    %v160 = vlaneseq
    %v161 = vshrl.u32 %v160, 7
    %v162 = vsub.s32 0, %v161
    %v163 = vrot.slane %v103, %v162
    %v165 = vmul.f32 %v155, %v163
    %v166 = vmul.f32 %v156, %v163
    %v167 = vmul.f32 %v157, %v163
    %v168 = vmul.f32 %v158, %v163
    %v170 = vlaneseq
    %v171 = vshrl.u32 %v170, 7
    %v172 = vsub.s32 0, %v171
    %v173 = vrot.slane %v104, %v172
    %v175 = vadd.f32 %v165, %v173
    %v176 = vadd.f32 %v166, %v173
    %v177 = vadd.f32 %v167, %v173
    %v178 = vadd.f32 %v168, %v173
    %179 = vst.msk [vmem:[#allocation2] sm:$0xff] %vm105, %v175
    %180 = vst.msk [vmem:[#allocation2 + $0x8] sm:$0xff] %vm105, %v176
    %181 = vst.msk [vmem:[#allocation2 + $0x10] sm:$0xff] %vm105, %v177
    %182 = vst.msk [vmem:[#allocation2 + $0x18] sm:$0xff] %vm105, %v178
    // Predicated region
    $region22: #{tpu_custom_call.1} parent=1 // pred_check
      _
    $region23: #{tpu_custom_call.1} parent=1 // pred_check_branch
      %184 = sbr.rel (0) target = $region25
    $region24: #{tpu_custom_call.1} parent=1 // pred_region
      %s186 = ssub.s32 512, 512
      %187 = vsyncadd [#allocation3], %s186
      %s188 = sshll.u32 [#allocation2], 4
      %s189 = int_to_ptr.vmem [resolvable:$true] %s188
      %194 = dma.vmem_to_hbm [thread:$0]  %s189, 512, %s5, [#allocation3], 128, 128, 8
    $region25: #{tpu_custom_call.1} parent=1 // pred_fallthru
      _
    // Predicated region
    $region26: #{tpu_custom_call.1} parent=1 // pred_check
      _
    $region27: #{tpu_custom_call.1} parent=1 // pred_check_branch
      %196 = sbr.rel (0) target = $region29
    $region28: #{tpu_custom_call.1} parent=1 // pred_region
      %197 = dma.done [#allocation3], 512
    $region29: #{tpu_custom_call.1} parent=1 // pred_fallthru
      _
    %198 = vsyncpa [#allocation3], 1

</llo_original>
